<compile_context>
chip_gen: v5e
topology: v5e:2x2
jax: 0.10.0
libtpu: 0.0.40
codegen_flags: <defaults>
</compile_context>

<pallas_src>
import functools

import jax
import jax.numpy as jnp
from jax.experimental import pallas as pl
from jax.experimental.pallas import tpu as pltpu

EPS = 0.001
_EPS2 = float(EPS) * float(EPS)      # Python float -> jaxpr literal inside the kernel
_LANES = 128
_MAX_BLOCK_ROWS = 2048               # (2048,128) f32 = 1 MiB per input buffer
_ACC_ROWS = 512                      # capped accumulator: 512*128*4 B = 256 KiB
_VMEM_LIMIT_BYTES = 32 * 1024 * 1024


@functools.lru_cache(maxsize=1)
def _tensorcores_per_chip():
    """Best-effort detection: 2 TensorCores per chip on v7x, else 1."""
    try:
        dev = jax.devices()[0]
        if dev.platform != "tpu":
            return 1
        kind = str(getattr(dev, "device_kind", "")).lower()
        if "v7" in kind or "7x" in kind:
            return 2
    except Exception:
        pass
    return 1


def _make_kernel(*, inv_n, block_rows, acc_rows, blocks_per_shard, num_blocks,
                 rows_in_last, gate_blocks):
    num_folds = block_rows // acc_rows
    assert num_folds * acc_rows == block_rows

    def _accumulate(acc_ref, val):
        # Pure VPU adds into the fixed-size accumulator; static, tile-aligned slices.
        if num_folds == 1:
            acc_ref[...] += val
        else:
            for f in range(num_folds):
                acc_ref[...] += val[f * acc_rows:(f + 1) * acc_rows, :]

    def kernel(x_ref, y_ref, out_ref, acc_ref):
        j = pl.program_id(1)

        @pl.when(j == 0)
        def _():
            acc_ref[...] = jnp.zeros_like(acc_ref)

        # Inputs stream from HBM in their native dtype; upcast in-register.
        d = x_ref[...].astype(jnp.float32) - y_ref[...].astype(jnp.float32)
        val = jnp.sqrt(d * d + _EPS2)

        if not gate_blocks:
            # Hot path: no masking, no per-block index math.
            _accumulate(acc_ref, val)
        else:
            blk = pl.program_id(0) * blocks_per_shard + j
            last = num_blocks - 1

            @pl.when(blk < last)
            def _():
                _accumulate(acc_ref, val)

            @pl.when(blk == last)
            def _():
                if rows_in_last == block_rows:
                    _accumulate(acc_ref, val)
                else:
                    row = jax.lax.broadcasted_iota(
                        jnp.int32, (block_rows, _LANES), 0)
                    _accumulate(acc_ref, jnp.where(row < rows_in_last, val, 0.0))
            # blk > last: duplicated clamped tail block under the core split -> skipped.

        @pl.when(j == pl.num_programs(1) - 1)
        def _():
            # One cross-lane/sublane reduce per shard + 1/n normalization.
            out_ref[...] = (jnp.sum(acc_ref[...], axis=(0, 1), keepdims=True)
                            * inv_n)

    return kernel


def cb_loss(output, gt):
    """mean(sqrt((output - gt)**2 + EPS**2)) as a Pallas streaming reduction."""
    assert output.shape == gt.shape
    n = output.size
    if n == 0:
        return jnp.float32(0.0)

    inv_n = 1.0 / float(n)
    x = output.reshape(-1)
    y = gt.reshape(-1)

    # Split a < 128-element ragged tail off the lane-aligned bulk instead of
    # jnp.pad-ing (which would materialize full HBM copies of both inputs).
    n_bulk = (n // _LANES) * _LANES
    tail = n - n_bulk

    tail_contrib = None
    if tail:
        dt = x[n_bulk:].astype(jnp.float32) - y[n_bulk:].astype(jnp.float32)
        tail_contrib = jnp.sum(jnp.sqrt(dt * dt + _EPS2)) * jnp.float32(inv_n)

    if n_bulk == 0:
        return tail_contrib

    rows = n_bulk // _LANES
    if tail:
        # Rare unaligned case (n % 128 != 0): feed the aligned bulk.
        x2 = x[:n_bulk].reshape(rows, _LANES)
        y2 = y[:n_bulk].reshape(rows, _LANES)
    else:
        # Common case: zero-copy reshape, no padding, no slicing.
        x2 = x.reshape(rows, _LANES)
        y2 = y.reshape(rows, _LANES)

    if rows > _MAX_BLOCK_ROWS:
        block_rows = _MAX_BLOCK_ROWS
        acc_rows = _ACC_ROWS
    else:
        block_rows = rows        # full-dim block (allowed even if not /8)
        acc_rows = rows

    num_blocks = -(-rows // block_rows)
    rows_in_last = rows - (num_blocks - 1) * block_rows

    # Engage both TensorCores only on v7x-class chips; single-TC chips get a
    # plain 1-shard grid (no duplicated tail block, no extra epilogue).
    num_shards = min(_tensorcores_per_chip(), num_blocks)
    blocks_per_shard = -(-num_blocks // num_shards)
    has_dup = num_shards * blocks_per_shard != num_blocks
    gate_blocks = has_dup or (rows_in_last != block_rows)

    if has_dup:
        def in_map(s, j):
            # Clamp so the duplicated tail step re-reads a valid block; the
            # kernel skips accumulating it.
            return (jnp.minimum(s * blocks_per_shard + j, num_blocks - 1), 0)
    else:
        def in_map(s, j):
            return (s * blocks_per_shard + j, 0)

    kernel = _make_kernel(inv_n=inv_n, block_rows=block_rows, acc_rows=acc_rows,
                          blocks_per_shard=blocks_per_shard, num_blocks=num_blocks,
                          rows_in_last=rows_in_last, gate_blocks=gate_blocks)

    if num_shards > 1:
        lead_sem = pltpu.CORE_PARALLEL          # actually split across v7x's 2 TCs
        in_spec_kwargs = dict(pipeline_mode=pl.Buffered(3))
    else:
        lead_sem = pltpu.ARBITRARY
        in_spec_kwargs = {}

    partials = pl.pallas_call(
        kernel,
        out_shape=jax.ShapeDtypeStruct((num_shards, 1, 1), jnp.float32),
        grid_spec=pltpu.PrefetchScalarGridSpec(
            num_scalar_prefetch=0,
            grid=(num_shards, blocks_per_shard),
            in_specs=[
                pl.BlockSpec((block_rows, _LANES), in_map, **in_spec_kwargs),
                pl.BlockSpec((block_rows, _LANES), in_map, **in_spec_kwargs),
            ],
            out_specs=pl.BlockSpec((None, 1, 1), lambda s, j: (s, 0, 0)),
            scratch_shapes=[pltpu.VMEM((acc_rows, _LANES), jnp.float32)],
        ),
        compiler_params=pltpu.CompilerParams(
            dimension_semantics=(lead_sem, pltpu.ARBITRARY),
            vmem_limit_bytes=_VMEM_LIMIT_BYTES,
        ),
    )(x2, y2)

    result = jnp.sum(partials)      # per-shard partials already carry 1/n
    if tail_contrib is not None:
        result = result + tail_contrib
    return result


def _reference(output, gt):
    o = output.astype(jnp.float32)
    g = gt.astype(jnp.float32)
    return jnp.mean(jnp.sqrt((o - g) ** 2 + jnp.float32(_EPS2)))


if __name__ == "__main__":
    key = jax.random.PRNGKey(0)
    loss_fn = jax.jit(cb_loss)

    cases = [
        ((2, 4, 16, 16), jnp.float32),    # single block, fully aligned
        ((2, 3, 17, 17), jnp.float32),    # n % 128 != 0 -> jnp tail path
        ((2, 4, 192, 192), jnp.float32),  # multi-block grid + ragged last block (row mask)
        ((2, 4, 64, 64), jnp.bfloat16),   # native bf16 streaming, in-kernel upcast
    ]

    for idx, (shape, dtype) in enumerate(cases):
        k1, k2 = jax.random.split(jax.random.fold_in(key, idx))
        output = jax.random.normal(k1, shape, dtype=jnp.float32).astype(dtype)
        gt = jax.random.normal(k2, shape, dtype=jnp.float32).astype(dtype)

        loss = loss_fn(output, gt)
        jax.block_until_ready(loss)

        ref = _reference(output, gt)
        assert jnp.allclose(loss, ref, rtol=1e-4, atol=1e-6), (shape, dtype, loss, ref)

    print("KERNEL_OK")
</pallas_src>

<mosaic_0001>
module attributes {stable_mosaic.version = 11 : i64} {
  func.func @kernel(%arg0: i32, %arg1: i32, %arg2: memref<16x128xf32, #tpu.memory_space<vmem>>, %arg3: memref<16x128xf32, #tpu.memory_space<vmem>>, %arg4: memref<1x1x1xf32, #tpu.memory_space<vmem>>, %arg5: memref<16x128xf32, #tpu.memory_space<vmem>>) attributes {dimension_semantics = [#tpu.dimension_semantics<arbitrary>, #tpu.dimension_semantics<arbitrary>], iteration_bounds = array<i64: 1, 1>, scalar_prefetch = 0 : i64, scratch_operands = 1 : i64, tpu.core_type = #tpu.core_type<tc>, window_params = [{transform_indices = @transform_0, window_bounds = array<i64: 16, 128>}, {transform_indices = @transform_1, window_bounds = array<i64: 16, 128>}, {transform_indices = @transform_2, window_bounds = array<i64: 1, 1, 1>}]} {
    %c0_i32 = arith.constant 0 : i32
    %0 = arith.cmpi eq, %arg1, %c0_i32 : i32
    %1 = arith.extui %0 : i1 to i32
    %c0_i32_0 = arith.constant 0 : i32
    %2 = arith.cmpi ne, %1, %c0_i32_0 : i32
    scf.if %2 {
      %cst_10 = arith.constant 0.000000e+00 : f32
      %16 = vector.broadcast %cst_10 : f32 to vector<16x128xf32>
      %c0_11 = arith.constant 0 : index
      %c0_12 = arith.constant 0 : index
      %17 = vector.load %arg5[%c0_11, %c0_12] : memref<16x128xf32, #tpu.memory_space<vmem>>, vector<16x128xf32>
      tpu.vector_store %arg5[%c0_11, %c0_12], %16 {strides = array<i32>} : memref<16x128xf32, #tpu.memory_space<vmem>>, vector<16x128xf32>,
    } else {
    }
    %c0 = arith.constant 0 : index
    %c0_1 = arith.constant 0 : index
    %3 = vector.load %arg2[%c0, %c0_1] : memref<16x128xf32, #tpu.memory_space<vmem>>, vector<16x128xf32>
    %c0_2 = arith.constant 0 : index
    %c0_3 = arith.constant 0 : index
    %4 = vector.load %arg3[%c0_2, %c0_3] : memref<16x128xf32, #tpu.memory_space<vmem>>, vector<16x128xf32>
    %5 = arith.subf %3, %4 : vector<16x128xf32>
    %6 = arith.mulf %5, %5 : vector<16x128xf32>
    %cst = arith.constant 9.99999997E-7 : f32
    %7 = vector.broadcast %cst : f32 to vector<16x128xf32>
    %8 = arith.addf %6, %7 : vector<16x128xf32>
    %9 = math.sqrt %8 : vector<16x128xf32>
    %c0_4 = arith.constant 0 : index
    %c0_5 = arith.constant 0 : index
    %10 = vector.load %arg5[%c0_4, %c0_5] : memref<16x128xf32, #tpu.memory_space<vmem>>, vector<16x128xf32>
    %11 = arith.addf %10, %9 : vector<16x128xf32>
    %c0_6 = arith.constant 0 : index
    %c0_7 = arith.constant 0 : index
    %12 = vector.load %arg5[%c0_6, %c0_7] : memref<16x128xf32, #tpu.memory_space<vmem>>, vector<16x128xf32>
    tpu.vector_store %arg5[%c0_6, %c0_7], %11 {strides = array<i32>} : memref<16x128xf32, #tpu.memory_space<vmem>>, vector<16x128xf32>,
    %c0_i32_8 = arith.constant 0 : i32
    %13 = arith.cmpi eq, %arg1, %c0_i32_8 : i32
    %14 = arith.extui %13 : i1 to i32
    %c0_i32_9 = arith.constant 0 : i32
    %15 = arith.cmpi ne, %14, %c0_i32_9 : i32
    scf.if %15 {
      %c0_10 = arith.constant 0 : index
      %c0_11 = arith.constant 0 : index
      %16 = vector.load %arg5[%c0_10, %c0_11] : memref<16x128xf32, #tpu.memory_space<vmem>>, vector<16x128xf32>
      %17 = vector.shape_cast %16 : vector<16x128xf32> to vector<1x16x128xf32>
      %cst_12 = arith.constant dense<0.000000e+00> : vector<1xf32>
      %18 = vector.multi_reduction <add>, %17, %cst_12 [1, 2] : vector<1x16x128xf32> to vector<1xf32>
      %19 = vector.shape_cast %18 : vector<1xf32> to vector<1x1x1xf32>
      %20 = vector.extract %19[0, 0, 0] : f32 from vector<1x1x1xf32>
      %21 = vector.broadcast %20 : f32 to vector<1x1xf32>
      %cst_13 = arith.constant 4.8828125E-4 : f32
      %22 = vector.broadcast %cst_13 : f32 to vector<1x1xf32>
      %23 = arith.mulf %21, %22 : vector<1x1xf32>
      %c0_14 = arith.constant 0 : index
      %c0_15 = arith.constant 0 : index
      %c0_16 = arith.constant 0 : index
      %24 = vector.load %arg4[%c0_14, %c0_15, %c0_16] : memref<1x1x1xf32, #tpu.memory_space<vmem>>, vector<1x1x1xf32>
      %25 = vector.shape_cast %24 : vector<1x1x1xf32> to vector<1x1xf32>
      %26 = vector.shape_cast %23 : vector<1x1xf32> to vector<1x1x1xf32>
      tpu.vector_store %arg4[%c0_14, %c0_15, %c0_16], %26 {strides = array<i32>} : memref<1x1x1xf32, #tpu.memory_space<vmem>>, vector<1x1x1xf32>,
    } else {
    }
    return
  }
  func.func @transform_0(%arg0: i32, %arg1: i32) -> (i32, i32) {
    %c1_i32 = arith.constant 1 : i32
    %0 = arith.muli %arg0, %c1_i32 : i32
    %1 = arith.addi %0, %arg1 : i32
    %c0_i32 = arith.constant 0 : i32
    %c0_i32_0 = arith.constant 0 : i32
    return %1, %c0_i32 : i32, i32
  }
  func.func @transform_1(%arg0: i32, %arg1: i32) -> (i32, i32) {
    %c1_i32 = arith.constant 1 : i32
    %0 = arith.muli %arg0, %c1_i32 : i32
    %1 = arith.addi %0, %arg1 : i32
    %c0_i32 = arith.constant 0 : i32
    %c0_i32_0 = arith.constant 0 : i32
    return %1, %c0_i32 : i32, i32
  }
  func.func @transform_2(%arg0: i32, %arg1: i32) -> (i32, i32, i32) {
    %c0_i32 = arith.constant 0 : i32
    %c0_i32_0 = arith.constant 0 : i32
    %c0_i32_1 = arith.constant 0 : i32
    return %arg0, %c0_i32, %c0_i32_0 : i32, i32, i32
  }
}

</mosaic_0001>

<llo_original>
// kernel: cb_loss.1
$region0: #{cb_loss.1}
  #allocation0 [shape = 'u32[]', space=smem, size = 0x4, offset = 0x4, fixed_abs, tag = 'smem constant byte address 0x4 - core index']
  #allocation1 [shape = 'u32[72,128]{1,0:T(1,128)}', space=vmem, size = 0x9000, scoped, tag = 'internal scratch']
  #allocation2 [shape = 'f32[16,128]{1,0:T(8,128)}', space=vmem, size = 0x2000, scoped, tag = 'scratch operand']
  %s0 = inlined_call_operand.vmem [shape: f32[16,128], index: 0, kind: input, shape index: {}]
  %s1 = inlined_call_operand.vmem [shape: f32[16,128], index: 1, kind: input, shape index: {}]
  %s2 = inlined_call_operand.hbm [shape: f32[1,1,1], index: 2, kind: output, shape index: {}]
  %s3 = sld [smem:[#allocation0]]
  $region26: #{cb_loss.1} parent=0
    _
  %s5 = ssub.s32 1, %s3
  %s6 = scalar_select 0, %s5, %s3
  $region1: #{cb_loss.1} parent=0
    #allocation3 [shape = 'u8[512]{0}', space=vmem, size = 0x400, scoped, tag = 'output window, operand 0, single buffered']
    #allocation4 [shape = 's32[1]{0}', space=sflag, size = 0x4, scoped, tag = 'scoped memory for cb_loss.1']
    %7 = vsyncpa [#allocation4], 0
    // Predicated region
    $region2: #{cb_loss.1} parent=1 // pred_check
      _
    $region3: #{cb_loss.1} parent=1 // pred_check_branch
      %9 = sbr.rel (0) target = $region5
    $region4: #{cb_loss.1} parent=1 // pred_region
      %s10 = sadd.s32 0, 0
      %s11 = smul.u32 2, %s10
      %p12 = scmp.lt.s32.totalorder %s11, 1
      %s13 = scalar_select %p12, %s11, 1
      %s14 = smul.addr %s13, 8
      %s15 = scalar_lea.vmem %s0, %s14
      %s16 = sadd.s32 0, 0
      %s17 = smul.u32 2, %s16
    $region5: #{cb_loss.1} parent=1 // pred_fallthru
      _
    // Predicated region
    $region6: #{cb_loss.1} parent=1 // pred_check
      _
    $region7: #{cb_loss.1} parent=1 // pred_check_branch
      %19 = sbr.rel (0) target = $region9
    $region8: #{cb_loss.1} parent=1 // pred_region
      %s20 = sadd.s32 0, 0
      %s21 = smul.u32 2, %s20
      %p22 = scmp.lt.s32.totalorder %s21, 1
      %s23 = scalar_select %p22, %s21, 1
      %s24 = smul.addr %s23, 8
      %s25 = scalar_lea.vmem %s1, %s24
      %s26 = sadd.s32 0, 0
      %s27 = smul.u32 2, %s26
    $region9: #{cb_loss.1} parent=1 // pred_fallthru
      _
    %s28 = sadd.s32 0, 0
    %s29 = smul.u32 2, %s28
    %p30 = scmp.lt.s32.totalorder %s29, 1
    %s31 = scalar_select %p30, %s29, 1
    %s32 = smul.addr %s31, 8
    %s33 = scalar_lea.vmem %s0, %s32
    %s34 = sadd.s32 0, 0
    %s35 = smul.u32 2, %s34
    %p36 = scmp.lt.s32.totalorder %s35, 1
    %s37 = scalar_select %p36, %s35, 1
    %s38 = smul.addr %s37, 8
    %s39 = scalar_lea.vmem %s1, %s38
    %s40 = sadd.s32 0, 0
    %s41 = smul.u32 2, %s40
    %p42 = scmp.lt.s32.totalorder %s41, 1
    %s43 = scalar_select %p42, %s41, 1
    %s44 = smul.addr %s43, 8
    %s45 = scalar_lea.vmem %s0, %s44
    %s46 = sadd.s32 0, 0
    %s47 = smul.u32 2, %s46
    %s48 = sadd.s32 0, 0
    %s49 = smul.u32 2, %s48
    %p50 = scmp.lt.s32.totalorder %s49, 1
    %s51 = scalar_select %p50, %s49, 1
    %s52 = smul.addr %s51, 8
    %s53 = scalar_lea.vmem %s1, %s52
    %s54 = sadd.s32 0, 0
    %s55 = smul.u32 2, %s54
    %p56 = scmp.eq.s32.totalorder 0, 0
    // Predicated region
    $region10: #{cb_loss.1} parent=1 // pred_check
      %p57 = pneg %p56
    $region11: #{cb_loss.1} parent=1 // pred_check_branch
      %59 = sbr.rel (%p57) target = $region13
    $region12: #{cb_loss.1} parent=1 // pred_region
      %60 = vst [vmem:[#allocation2] sm:$0xff] 0.0
      %61 = vst [vmem:[#allocation2 + $0x8] sm:$0xff] 0.0
    $region13: #{cb_loss.1} parent=1 // pred_fallthru
      _
    %v62 = vld [vmem:[%s45] sm:$0xff]
    %v63 = vld [vmem:[%s45 + $0x8] sm:$0xff]
    %v64 = vld [vmem:[%s53] sm:$0xff]
    %v65 = vld [vmem:[%s53 + $0x8] sm:$0xff]
    %v66 = vsub.f32 %v62, %v64
    %v67 = vsub.f32 %v63, %v65
    %v68 = vmul.f32 %v66, %v66
    %v69 = vmul.f32 %v67, %v67
    %v70 = vadd.f32 %v68, 1e-06
    %v71 = vadd.f32 %v69, 1e-06
    %v72 = vrsqrt.pop %v70
    %v73 = vmul.f32 %v72, %v70
    %v74 = vmul.f32 %v73, %v72
    %v75 = vmul.f32 0.5, %v74
    %v76 = vsub.f32 1.5, %v75
    %v77 = vmul.f32 %v72, %v76
    %v78 = vmul.f32 %v70, %v77
    %vm79 = vcmp.eq.f32.partialorder %v70, inf
    %v80 = vsel %vm79, %v70, %v78
    %vm81 = vcmp.eq.f32.partialorder %v70, 0.0
    %v82 = vand.u32 %v70, 2147483648
    %v83 = vsel %vm81, %v82, %v80
    %v84 = vrsqrt.pop %v71
    %v85 = vmul.f32 %v84, %v71
    %v86 = vmul.f32 %v85, %v84
    %v87 = vmul.f32 0.5, %v86
    %v88 = vsub.f32 1.5, %v87
    %v89 = vmul.f32 %v84, %v88
    %v90 = vmul.f32 %v71, %v89
    %vm91 = vcmp.eq.f32.partialorder %v71, inf
    %v92 = vsel %vm91, %v71, %v90
    %vm93 = vcmp.eq.f32.partialorder %v71, 0.0
    %v94 = vand.u32 %v71, 2147483648
    %v95 = vsel %vm93, %v94, %v92
    %v96 = vld [vmem:[#allocation2] sm:$0xff]
    %v97 = vld [vmem:[#allocation2 + $0x8] sm:$0xff]
    %v98 = vadd.f32 %v96, %v83
    %v99 = vadd.f32 %v97, %v95
    %100 = vst [vmem:[#allocation2] sm:$0xff] %v98
    %101 = vst [vmem:[#allocation2 + $0x8] sm:$0xff] %v99
    // Predicated region
    $region14: #{cb_loss.1} parent=1 // pred_check
      %p102 = pneg %p56
    $region15: #{cb_loss.1} parent=1 // pred_check_branch
      %104 = sbr.rel (%p102) target = $region17
    $region16: #{cb_loss.1} parent=1 // pred_region
      %v105 = vld [vmem:[#allocation2] sm:$0xff]
      %v106 = vld [vmem:[#allocation2 + $0x8] sm:$0xff]
      %v107 = vadd.f32 %v105, %v106
      %108 = vadd.xlane.f32.xlu0 %v107
      %v109 = vpop.xlane.xlu0 %108
      %v110 = vrot.slane %v109, 4
      %v111 = vadd.f32 %v109, %v110
      %v112 = vrot.slane %v111, 2
      %v113 = vadd.f32 %v111, %v112
      %v114 = vrot.slane %v113, 1
      %v115 = vadd.f32 %v113, %v114
      %s116 = vtos %v115
      %v117 = vstv %s116
      %v118 = vmul.f32 %v117, 0.00048828125
      %vm119 = vcmask 0
      %120 = vst.msk [vmem:[#allocation3] sm:$0x1] %vm119, %v118
    $region17: #{cb_loss.1} parent=1 // pred_fallthru
      _
    // Predicated region
    $region18: #{cb_loss.1} parent=1 // pred_check
      _
    $region19: #{cb_loss.1} parent=1 // pred_check_branch
      %122 = sbr.rel (0) target = $region21
    $region20: #{cb_loss.1} parent=1 // pred_region
      %124 = vsyncadd [#allocation4], 0
      %s126 = sshll.u32 [#allocation3], 4
      %s127 = int_to_ptr.vmem [resolvable:$true] %s126
      %s128 = sshll.u32 %s2, 4
      %s129 = int_to_ptr.hbm [resolvable:$true] %s128
      %131 = dma.vmem_to_hbm [thread:$0]  %s127, 16, %s129, [#allocation4]
    $region21: #{cb_loss.1} parent=1 // pred_fallthru
      _
    // Predicated region
    $region22: #{cb_loss.1} parent=1 // pred_check
      _
    $region23: #{cb_loss.1} parent=1 // pred_check_branch
      %133 = sbr.rel (0) target = $region25
    $region24: #{cb_loss.1} parent=1 // pred_region
      %135 = dma.done [#allocation4], 16
    $region25: #{cb_loss.1} parent=1 // pred_fallthru
      _
    %136 = vsyncpa [#allocation4], 1

</llo_original>
